<compile_context>
chip_gen: v7x
topology: tpu7x:2x2x1
jax: 0.10.0
libtpu: 0.0.40
codegen_flags: <defaults>
</compile_context>

<pallas_src>
import math

import jax
import jax.numpy as jnp
from jax.experimental import pallas as pl
from jax.experimental.pallas import tpu as pltpu

_LN_1E4 = math.log(10000.0)


def _make_kernel(dim: int, width: int, reps: int, slab: bool):
    """Kernel closure: out = [sin | cos](nl * exp(-ln(1e4) * k / count))."""
    count = dim // 2
    scale = -_LN_1E4 / count

    def kernel(nl_ref, out_ref):
        # --- per-lane tables, rebuilt per block on a (1, width) tile.
        lane = jax.lax.broadcasted_iota(jnp.int32, (1, width), 1)
        if slab:
            # lane l belongs to batch column l // dim; built from compares only
            # (no vector integer div/mod).
            rep_of_lane = (lane >= dim).astype(jnp.int32)
            for j in range(2, reps):                      # reps <= 8, static unroll
                rep_of_lane = rep_of_lane + (lane >= j * dim).astype(jnp.int32)
            feat = lane - dim * rep_of_lane               # feature index per lane
        else:
            rep_of_lane = None
            feat = lane                                   # pad lanes (>= dim) are sliced off outside

        is_cos = feat >= count
        k = jnp.where(is_cos, feat - count, feat).astype(jnp.float32)
        freq = jnp.exp(scale * k)                         # (1, width)

        # --- compact noise level, expanded across lanes in-kernel.
        nl = nl_ref[...].astype(jnp.float32)              # (bm, reps) or (bm, 1)
        if slab:
            nl_exp = jnp.where(rep_of_lane == 0, nl[:, 0:1], 0.0)
            for j in range(1, reps):
                nl_exp = nl_exp + jnp.where(rep_of_lane == j, nl[:, j:j + 1], 0.0)
        else:
            nl_exp = nl                                   # (bm, 1) broadcasts over lanes

        enc = nl_exp * freq
        # exact cos on the cos half (no sin(x + pi/2) ulp issue for large nl)
        out = jnp.where(is_cos, jnp.cos(enc), jnp.sin(enc))
        out_ref[...] = out.astype(out_ref.dtype)

    return kernel


def positional_encoding(noise_level: jax.Array, dim: int,
                        out_dtype=jnp.float32, *,
                        force_pallas: bool = False,
                        min_pallas_elems: int = 16384) -> jax.Array:
    """Equivalent of PositionalEncoding(dim).forward(noise_level)."""
    assert dim % 2 == 0, "dim must be even"
    nl = jnp.reshape(noise_level, (-1,)).astype(jnp.float32)   # view(-1)
    b = nl.shape[0]
    count = dim // 2

    # Tiny shapes: a standalone custom call is pure launch overhead and blocks
    # XLA fusion into the consumer — leave as plain jnp.
    if (not force_pallas) and (b * dim < min_pallas_elems):
        step = jnp.arange(count, dtype=jnp.float32) / count
        enc = nl[:, None] * jnp.exp(-_LN_1E4 * step)[None, :]
        return jnp.concatenate([jnp.sin(enc), jnp.cos(enc)], axis=-1).astype(out_dtype)

    itemsize = jnp.dtype(out_dtype).itemsize

    # --- layout selection -------------------------------------------------
    # slab: pack reps = 128 // dim batch elements per 128-lane row -> fully
    # lane-dense output, reshaped back to (B, dim) for free outside.
    slab = (dim < 128) and (128 % dim == 0) and ((b * dim) % 128 == 0) \
        and (128 // dim <= 8)
    if slab:
        reps = 128 // dim
        rows, width = (b * dim) // 128, 128
        nl_in = nl.reshape(rows, reps)          # compact: exactly B floats in
    else:
        reps = 1
        rows = b
        width = ((dim + 127) // 128) * 128      # lane-pad -> unmasked vst
        nl_in = nl.reshape(rows, 1)

    # --- block sizing -------------------------------------------------------
    # ~4 MiB output blocks: big enough to amortize the ~0.35 us/grid-step
    # overhead, small enough that 2x double-buffered outputs + tiny inputs fit
    # every generation's scoped VMEM (v5e/v6e 128 MiB, v7x 64 MiB physical).
    target_bytes = 4 * 1024 * 1024
    cap = max(8, ((target_bytes // (width * itemsize)) // 8) * 8)
    if rows <= 8:
        block_rows = rows                       # single full-extent block
    else:
        # keep >= 2 grid steps whenever possible so v7x's 2nd TensorCore works
        half = max(8, ((rows + 15) // 16) * 8)  # cdiv(rows, 2) rounded up to 8
        block_rows = min(cap, half)
    grid = (pl.cdiv(rows, block_rows),)

    out = pl.pallas_call(
        _make_kernel(dim, width, reps, slab),
        out_shape=jax.ShapeDtypeStruct((rows, width), out_dtype),
        grid_spec=pltpu.PrefetchScalarGridSpec(
            num_scalar_prefetch=0,
            grid=grid,
            in_specs=[pl.BlockSpec((block_rows, nl_in.shape[1]), lambda i: (i, 0))],
            out_specs=pl.BlockSpec((block_rows, width), lambda i: (i, 0)),
        ),
        compiler_params=pltpu.CompilerParams(
            dimension_semantics=("parallel",),          # shards rows across TCs
            vmem_limit_bytes=32 * 1024 * 1024,
        ),
        cost_estimate=pl.CostEstimate(
            flops=6 * rows * width,                     # mul/add/select per element
            transcendentals=2 * rows * width,           # sin + cos per element
            bytes_accessed=nl_in.size * 4 + rows * width * itemsize,
        ),
    )(nl_in)

    if slab:
        return out.reshape(b, dim)                      # contiguous -> free reshape
    if width != dim:
        out = out[:, :dim]                              # drop pad lanes
    return out


def _reference(noise_level: jax.Array, dim: int) -> jax.Array:
    nl = jnp.reshape(noise_level, (-1,)).astype(jnp.float32)
    count = dim // 2
    step = jnp.arange(count, dtype=jnp.float32) / count
    enc = nl[:, None] * jnp.exp(-_LN_1E4 * step[None, :])
    return jnp.concatenate([jnp.sin(enc), jnp.cos(enc)], axis=-1)


if __name__ == "__main__":
    key = jax.random.PRNGKey(0)
    k0, k1, k2, k3 = jax.random.split(key, 4)

    # 1) Shipped shape (B=8, dim=32): auto path stays plain jnp (XLA fusion);
    #    also force the pallas slab path once to exercise the kernel.
    b, dim = 8, 32
    nl = jax.random.uniform(k0, (b,), dtype=jnp.float32)
    ref = _reference(nl, dim)
    out_auto = jax.block_until_ready(positional_encoding(nl, dim))
    out_pal = jax.block_until_ready(positional_encoding(nl, dim, force_pallas=True))
    assert out_pal.shape == (b, dim), out_pal.shape
    assert jnp.allclose(out_auto, ref, atol=1e-5, rtol=1e-5), "mismatch (jnp path)"
    assert jnp.allclose(out_pal, ref, atol=1e-5, rtol=1e-5), "mismatch (slab path, small)"

    # 2) Larger batch: slab path, compact nl, multi-step grid (>=2 blocks).
    b2, dim2 = 1024, 32
    nl2 = jax.random.uniform(k1, (b2,), dtype=jnp.float32)
    out2 = jax.block_until_ready(positional_encoding(nl2, dim2, force_pallas=True))
    assert jnp.allclose(out2, _reference(nl2, dim2), atol=1e-5, rtol=1e-5), \
        "mismatch (slab path, large)"

    # 3) Fallback path: dim not a divisor of 128 -> lane-padded output,
    #    ragged rows (rows % block_rows != 0) to exercise masked last block.
    b3, dim3 = 20, 48
    nl3 = jax.random.uniform(k2, (b3,), dtype=jnp.float32)
    out3 = jax.block_until_ready(positional_encoding(nl3, dim3, force_pallas=True))
    assert out3.shape == (b3, dim3), out3.shape
    assert jnp.allclose(out3, _reference(nl3, dim3), atol=1e-5, rtol=1e-5), \
        "mismatch (padded path)"

    # 4) dim >= 128 path: natural (rows, 1) broadcast, multi-step grid.
    b4, dim4 = 16, 256
    nl4 = jax.random.uniform(k3, (b4,), dtype=jnp.float32)
    out4 = jax.block_until_ready(positional_encoding(nl4, dim4, force_pallas=True))
    assert jnp.allclose(out4, _reference(nl4, dim4), atol=1e-5, rtol=1e-5), \
        "mismatch (wide path)"

    print("KERNEL_OK")
</pallas_src>

<mosaic_0001>
module attributes {stable_mosaic.version = 11 : i64} {
  func.func @kernel(%arg0: i32, %arg1: memref<2x4xf32, #tpu.memory_space<vmem>>, %arg2: memref<2x128xf32, #tpu.memory_space<vmem>>) attributes {dimension_semantics = [#tpu.dimension_semantics<parallel>], iteration_bounds = array<i64: 1>, scalar_prefetch = 0 : i64, scratch_operands = 0 : i64, tpu.core_type = #tpu.core_type<tc>, window_params = [{transform_indices = @transform_0, window_bounds = array<i64: 2, 4>}, {transform_indices = @transform_1, window_bounds = array<i64: 2, 128>}]} {
    %0 = tpu.iota {dimensions = array<i32: 1>} : vector<1x128xi32>
    %c32_i32 = arith.constant 32 : i32
    %1 = vector.broadcast %c32_i32 : i32 to vector<1x128xi32>
    %2 = arith.cmpi sge, %0, %1 : vector<1x128xi32>
    %3 = arith.extui %2 : vector<1x128xi1> to vector<1x128xi32>
    %c64_i32 = arith.constant 64 : i32
    %4 = vector.broadcast %c64_i32 : i32 to vector<1x128xi32>
    %5 = arith.cmpi sge, %0, %4 : vector<1x128xi32>
    %6 = arith.extui %5 : vector<1x128xi1> to vector<1x128xi32>
    %7 = arith.addi %3, %6 : vector<1x128xi32>
    %c96_i32 = arith.constant 96 : i32
    %8 = vector.broadcast %c96_i32 : i32 to vector<1x128xi32>
    %9 = arith.cmpi sge, %0, %8 : vector<1x128xi32>
    %10 = arith.extui %9 : vector<1x128xi1> to vector<1x128xi32>
    %11 = arith.addi %7, %10 : vector<1x128xi32>
    %c32_i32_0 = arith.constant 32 : i32
    %12 = vector.broadcast %c32_i32_0 : i32 to vector<1x128xi32>
    %13 = arith.muli %12, %11 : vector<1x128xi32>
    %14 = arith.subi %0, %13 : vector<1x128xi32>
    %c16_i32 = arith.constant 16 : i32
    %15 = vector.broadcast %c16_i32 : i32 to vector<1x128xi32>
    %16 = arith.cmpi sge, %14, %15 : vector<1x128xi32>
    %c16_i32_1 = arith.constant 16 : i32
    %17 = vector.broadcast %c16_i32_1 : i32 to vector<1x128xi32>
    %18 = arith.subi %14, %17 : vector<1x128xi32>
    %19 = arith.select %16, %18, %14 : vector<1x128xi1>, vector<1x128xi32>
    %20 = arith.sitofp %19 : vector<1x128xi32> to vector<1x128xf32>
    %cst = arith.constant -0.575646281 : f32
    %21 = vector.broadcast %cst : f32 to vector<1x128xf32>
    %22 = arith.mulf %21, %20 : vector<1x128xf32>
    %23 = math.exp %22 : vector<1x128xf32>
    %c0 = arith.constant 0 : index
    %c0_2 = arith.constant 0 : index
    %24 = vector.load %arg1[%c0, %c0_2] : memref<2x4xf32, #tpu.memory_space<vmem>>, vector<2x4xf32>
    %c0_i32 = arith.constant 0 : i32
    %25 = vector.broadcast %c0_i32 : i32 to vector<1x128xi32>
    %26 = arith.cmpi eq, %11, %25 : vector<1x128xi32>
    %27 = vector.extract_strided_slice %24 {offsets = [0, 0], sizes = [2, 1], strides = [1, 1]} : vector<2x4xf32> to vector<2x1xf32>
    %cst_3 = arith.constant 0.000000e+00 : f32
    %28 = vector.shape_cast %26 : vector<1x128xi1> to vector<1x128xi1>
    %29 = vector.broadcast %28 : vector<1x128xi1> to vector<2x128xi1>
    %30 = vector.shape_cast %27 : vector<2x1xf32> to vector<2x1xf32>
    %31 = vector.broadcast %30 : vector<2x1xf32> to vector<2x128xf32>
    %32 = vector.broadcast %cst_3 : f32 to vector<2x128xf32>
    %33 = arith.select %29, %31, %32 : vector<2x128xi1>, vector<2x128xf32>
    %c1_i32 = arith.constant 1 : i32
    %34 = vector.broadcast %c1_i32 : i32 to vector<1x128xi32>
    %35 = arith.cmpi eq, %11, %34 : vector<1x128xi32>
    %36 = vector.extract_strided_slice %24 {offsets = [0, 1], sizes = [2, 1], strides = [1, 1]} : vector<2x4xf32> to vector<2x1xf32>
    %cst_4 = arith.constant 0.000000e+00 : f32
    %37 = vector.shape_cast %35 : vector<1x128xi1> to vector<1x128xi1>
    %38 = vector.broadcast %37 : vector<1x128xi1> to vector<2x128xi1>
    %39 = vector.shape_cast %36 : vector<2x1xf32> to vector<2x1xf32>
    %40 = vector.broadcast %39 : vector<2x1xf32> to vector<2x128xf32>
    %41 = vector.broadcast %cst_4 : f32 to vector<2x128xf32>
    %42 = arith.select %38, %40, %41 : vector<2x128xi1>, vector<2x128xf32>
    %43 = arith.addf %33, %42 : vector<2x128xf32>
    %c2_i32 = arith.constant 2 : i32
    %44 = vector.broadcast %c2_i32 : i32 to vector<1x128xi32>
    %45 = arith.cmpi eq, %11, %44 : vector<1x128xi32>
    %46 = vector.extract_strided_slice %24 {offsets = [0, 2], sizes = [2, 1], strides = [1, 1]} : vector<2x4xf32> to vector<2x1xf32>
    %cst_5 = arith.constant 0.000000e+00 : f32
    %47 = vector.shape_cast %45 : vector<1x128xi1> to vector<1x128xi1>
    %48 = vector.broadcast %47 : vector<1x128xi1> to vector<2x128xi1>
    %49 = vector.shape_cast %46 : vector<2x1xf32> to vector<2x1xf32>
    %50 = vector.broadcast %49 : vector<2x1xf32> to vector<2x128xf32>
    %51 = vector.broadcast %cst_5 : f32 to vector<2x128xf32>
    %52 = arith.select %48, %50, %51 : vector<2x128xi1>, vector<2x128xf32>
    %53 = arith.addf %43, %52 : vector<2x128xf32>
    %c3_i32 = arith.constant 3 : i32
    %54 = vector.broadcast %c3_i32 : i32 to vector<1x128xi32>
    %55 = arith.cmpi eq, %11, %54 : vector<1x128xi32>
    %56 = vector.extract_strided_slice %24 {offsets = [0, 3], sizes = [2, 1], strides = [1, 1]} : vector<2x4xf32> to vector<2x1xf32>
    %cst_6 = arith.constant 0.000000e+00 : f32
    %57 = vector.shape_cast %55 : vector<1x128xi1> to vector<1x128xi1>
    %58 = vector.broadcast %57 : vector<1x128xi1> to vector<2x128xi1>
    %59 = vector.shape_cast %56 : vector<2x1xf32> to vector<2x1xf32>
    %60 = vector.broadcast %59 : vector<2x1xf32> to vector<2x128xf32>
    %61 = vector.broadcast %cst_6 : f32 to vector<2x128xf32>
    %62 = arith.select %58, %60, %61 : vector<2x128xi1>, vector<2x128xf32>
    %63 = arith.addf %53, %62 : vector<2x128xf32>
    %64 = vector.broadcast %23 : vector<1x128xf32> to vector<2x128xf32>
    %65 = arith.mulf %63, %64 : vector<2x128xf32>
    %66 = math.cos %65 : vector<2x128xf32>
    %67 = math.sin %65 : vector<2x128xf32>
    %68 = vector.shape_cast %16 : vector<1x128xi1> to vector<1x128xi1>
    %69 = vector.broadcast %68 : vector<1x128xi1> to vector<2x128xi1>
    %70 = arith.select %69, %66, %67 : vector<2x128xi1>, vector<2x128xf32>
    %c0_7 = arith.constant 0 : index
    %c0_8 = arith.constant 0 : index
    %71 = vector.load %arg2[%c0_7, %c0_8] : memref<2x128xf32, #tpu.memory_space<vmem>>, vector<2x128xf32>
    tpu.vector_store %arg2[%c0_7, %c0_8], %70 {strides = array<i32>} : memref<2x128xf32, #tpu.memory_space<vmem>>, vector<2x128xf32>,
    return
  }
  func.func @transform_0(%arg0: i32) -> (i32, i32) {
    %c0_i32 = arith.constant 0 : i32
    %c0_i32_0 = arith.constant 0 : i32
    return %arg0, %c0_i32 : i32, i32
  }
  func.func @transform_1(%arg0: i32) -> (i32, i32) {
    %c0_i32 = arith.constant 0 : i32
    %c0_i32_0 = arith.constant 0 : i32
    return %arg0, %c0_i32 : i32, i32
  }
}

</mosaic_0001>

<llo_original>
// kernel: tpu_custom_call.1
$region0: #{tpu_custom_call.1}
  #allocation0 [shape = 'u32[]', space=smem, size = 0x4, offset = 0x4, fixed_abs, tag = 'smem constant byte address 0x4 - core index']
  #allocation1 [shape = 'u32[144,128]{1,0:T(1,128)}', space=vmem, size = 0x12000, scoped, tag = 'internal scratch']
  %s0 = inlined_call_operand.hbm [shape: f32[2,4], index: 0, kind: input, shape index: {}]
  %s1 = inlined_call_operand.hbm [shape: f32[2,128], index: 1, kind: output, shape index: {}]
  %s2 = sld [smem:[#allocation0]]
  $region18: #{tpu_custom_call.1} parent=0
    _
  %s4 = ssub.s32 1, %s2
  %s5 = scalar_select 0, %s4, %s2
  $region1: #{tpu_custom_call.1} parent=0
    #allocation2 [shape = 'u8[1024]{0}', space=vmem, size = 0x400, scoped, tag = 'input window, operand 0, single buffered']
    #allocation3 [shape = 's32[1]{0}', space=sflag, size = 0x4, scoped, tag = 'scoped memory for tpu_custom_call.1']
    #allocation4 [shape = 's32[1]{0}', space=sflag, size = 0x4, scoped, tag = 'scoped memory for tpu_custom_call.1']
    #allocation5 [shape = 'u8[1024]{0}', space=vmem, size = 0x400, scoped, tag = 'output window, operand 0, single buffered']
    %6 = vsyncpa [#allocation3], 0
    %7 = vsyncpa [#allocation4], 0
    // Predicated region
    $region2: #{tpu_custom_call.1} parent=1 // pred_check
      _
    $region3: #{tpu_custom_call.1} parent=1 // pred_check_branch
      %9 = sbr.rel (0) target = $region5
    $region4: #{tpu_custom_call.1} parent=1 // pred_region
      %s11 = ssub.s32 32, 32
      %12 = vsyncadd [#allocation3], %s11
      %s14 = sshll.u32 [#allocation2], 4
      %s15 = int_to_ptr.vmem [resolvable:$true] %s14
      %17 = dma.hbm_to_vmem [thread:$0]  %s0, 32, %s15, [#allocation3]
    $region5: #{tpu_custom_call.1} parent=1 // pred_fallthru
      _
    // Predicated region
    $region6: #{tpu_custom_call.1} parent=1 // pred_check
      _
    $region7: #{tpu_custom_call.1} parent=1 // pred_check_branch
      %19 = sbr.rel (0) target = $region9
    $region8: #{tpu_custom_call.1} parent=1 // pred_region
      %20 = dma.done [#allocation3], 32
    $region9: #{tpu_custom_call.1} parent=1 // pred_fallthru
      _
    %v21 = vlaneseq
    %v22 = vand.u32 %v21, 127
    %vm23 = vcmp.ge.s32.totalorder %v22, 32
    %v24 = vsel %vm23, 1, 0
    %vm25 = vcmp.ge.s32.totalorder %v22, 64
    %v26 = vsel %vm25, 1, 0
    %v27 = vadd.s32 %v24, %v26
    %vm28 = vcmp.ge.s32.totalorder %v22, 96
    %v29 = vsel %vm28, 1, 0
    %v30 = vadd.s32 %v27, %v29
    %v31 = vmul.u32 %v30, 32
    %v32 = vsub.s32 %v22, %v31
    %vm33 = vcmp.ge.s32.totalorder %v32, 16
    %v34 = vsub.s32 %v32, 16
    %v35 = vsel %vm33, %v34, %v32
    %v36 = vcvt.s32.f32 %v35
    %v37 = vmul.f32 %v36, -0.5756463
    %v38 = vmul.f32 %v37, 1.442695
    %v39 = vpow.pop %v38
    %v40 = vld [vmem:[#allocation2] sm:$0x3]
    %vm41 = vcmp.eq.s32.totalorder %v30, 0
    %v42 = vsel %vm41, 1, 0
    %vm43 = vcmp.eq.s32.totalorder %v42, 1
    %45 = vset.pattern.permute.xlu0 0
    %46 = vperm.xlu0 %45, %v40
    %v47 = vpop.permute.xlu0 %46
    %v49 = vsel %vm43, %v47, 0.0
    %vm50 = vcmp.eq.s32.totalorder %v30, 1
    %v51 = vsel %vm50, 1, 0
    %vm52 = vcmp.eq.s32.totalorder %v51, 1
    %53 = vset.pattern.permute.xlu0 1
    %54 = vperm.xlu0 %53, %v40
    %v55 = vpop.permute.xlu0 %54
    %v57 = vsel %vm52, %v55, 0.0
    %v58 = vadd.f32 %v49, %v57
    %vm59 = vcmp.eq.s32.totalorder %v30, 2
    %v60 = vsel %vm59, 1, 0
    %vm61 = vcmp.eq.s32.totalorder %v60, 1
    %62 = vset.pattern.permute.xlu0 2
    %63 = vperm.xlu0 %62, %v40
    %v64 = vpop.permute.xlu0 %63
    %v66 = vsel %vm61, %v64, 0.0
    %v67 = vadd.f32 %v58, %v66
    %vm68 = vcmp.eq.s32.totalorder %v30, 3
    %v69 = vsel %vm68, 1, 0
    %vm70 = vcmp.eq.s32.totalorder %v69, 1
    %71 = vset.pattern.permute.xlu0 3
    %72 = vperm.xlu0 %71, %v40
    %v73 = vpop.permute.xlu0 %72
    %v75 = vsel %vm70, %v73, 0.0
    %v76 = vadd.f32 %v67, %v75
    %v77 = vmul.f32 %v76, %v39
    %v78 = vand.u32 2147483647, %v77
    %vm79 = vcmp.le.f32.partialorder %v78, 0.7853982
    %vm80 = vcmp.lt.s32.totalorder %v77, 0
    %v81 = vand.u32 %v77, 2139095040
    %v82 = vshrl.u32 %v81, 23
    %v83 = vsub.s32 %v82, 127
    %v84 = vand.u32 2147483647, %v77
    %v85 = vand.u32 %v84, 8388607
    %v86 = vor.u32 %v85, 8388608
    %v87 = vsub.s32 0, %v86
    %v88 = vadd.s32 %v83, 1
    %vm89 = vcmp.gt.s32.totalorder %v88, 0
    %v90 = vsel %vm89, %v88, 0
    %v91 = vshrl.u32 %v90, 5
    %v92 = vand.u32 %v90, 31
    %v93 = vsub.s32 32, %v92
    %v94 = vshrl.u32 683565275, %v93
    %v95 = vshll.u32 683565275, %v92
    %v96 = vshrl.u32 2475754826, %v93
    %v97 = vor.u32 %v95, %v96
    %v98 = vshll.u32 2475754826, %v92
    %v99 = vshrl.u32 2131351028, %v93
    %v100 = vor.u32 %v98, %v99
    %v101 = vshll.u32 2131351028, %v92
    %v102 = vshrl.u32 2102212464, %v93
    %v103 = vor.u32 %v101, %v102
    %v104 = vshll.u32 2102212464, %v92
    %v105 = vshrl.u32 920167782, %v93
    %v106 = vor.u32 %v104, %v105
    %v107 = vshll.u32 920167782, %v92
    %v108 = vshrl.u32 1326507024, %v93
    %v109 = vor.u32 %v107, %v108
    %vm110 = vcmp.lt.s32.totalorder %v91, 1
    %vm111 = vcmp.lt.s32.totalorder %v91, 2
    %vm112 = vcmp.lt.s32.totalorder %v91, 3
    %vm113 = vcmp.lt.s32.totalorder %v91, 4
    %v114 = vsel %vm110, %v94, %v97
    %v115 = vsel %vm113, %v103, 2102212464
    %v116 = vsel %vm112, %v100, %v115
    %v117 = vsel %vm111, %v114, %v116
    %v118 = vsel %vm110, %v97, %v100
    %v119 = vsel %vm113, %v106, 920167782
    %v120 = vsel %vm112, %v103, %v119
    %v121 = vsel %vm111, %v118, %v120
    %v122 = vsel %vm110, %v100, %v103
    %v123 = vsel %vm113, %v109, 1326507024
    %v124 = vsel %vm112, %v106, %v123
    %v125 = vsel %vm111, %v122, %v124
    %v126 = vshll.u32 %v86, 8
    %v127 = vmul.u32.u64.compose %v126, %v125
    %v128 = vextract.low.u32 %v127
    %v129 = vextract.high.u32 %v127
    %v130 = vmul.u32.u64.compose %v126, %v121
    %v131 = vextract.low.u32 %v130
    %v132 = vextract.high.u32 %v130
    %v133 = vmul.u32 %v126, %v117
    %v134 = vadd.s32 %v129, %v131
    %vm135 = vc.u32 %v129, %v131
    %v136 = vadd.s32 %v132, 1
    %v137 = vsel %vm135, %v136, %v132
    %v138 = vadd.s32 %v133, %v137
    %v139 = vadd.s32 %v138, 536870912
    %v140 = vshrl.u32 %v139, 30
    %v141 = vshll.u32 %v140, 30
    %v142 = vsub.s32 %v138, %v141
    %vm143 = vcmp.lt.s32.totalorder %v142, 0
    %v144 = vsub.s32 0, %v142
    %v145 = vsel %vm143, %v144, %v142
    %v146 = vclz %v145
    %v147 = vsub.s32 %v146, 2
    %vm148 = vcmp.gt.s32.totalorder 0, %v147
    %v149 = vsel %vm148, 0, %v147
    %v150 = vsub.s32 32, %v149
    %v151 = vshll.u32 %v142, %v149
    %v152 = vshrl.u32 %v134, %v150
    %v153 = vor.u32 %v151, %v152
    %v154 = vsub.s32 4294967266, %v149
    %v155 = vadd.s32 %v154, 127
    %v156 = vshll.u32 %v155, 23
    %v157 = vor.u32 4788187, %v156
    %v158 = vand.u32 2147483647, %v157
    %v160 = vcvt.s32.f32 %v153
    %v161 = vmul.f32 %v160, %v158
    %v162 = vxor.u32 %v161, 2147483648
    %v163 = vsel %vm80, %v162, %v161
    %v164 = vsub.s32 4, %v140
    %v165 = vsel %vm80, %v164, %v140
    %v166 = vsel %vm79, %v77, %v163
    %v167 = vsel %vm79, 0, %v165
    %v168 = vcosq.f32.pop %v166
    %v169 = vsinq.f32.pop %v166
    %vm170 = vweird.f32 %v77
    %v171 = vand.u32 %v167, 3
    %vm172 = vcmp.lt.s32.totalorder %v171, 2
    %vm173 = vcmp.eq.s32.totalorder %v171, 0
    %v174 = vxor.u32 %v169, 2147483648
    %v175 = vsel %vm173, %v168, %v174
    %vm176 = vcmp.eq.s32.totalorder %v171, 2
    %v177 = vxor.u32 %v168, 2147483648
    %v178 = vsel %vm176, %v177, %v169
    %v179 = vsel %vm172, %v175, %v178
    %v180 = vsel %vm170, nan, %v179
    %v181 = vand.u32 2147483647, %v77
    %vm182 = vcmp.le.f32.partialorder %v181, 0.7853982
    %vm183 = vcmp.lt.s32.totalorder %v77, 0
    %v184 = vand.u32 %v77, 2139095040
    %v185 = vshrl.u32 %v184, 23
    %v186 = vsub.s32 %v185, 127
    %v187 = vand.u32 2147483647, %v77
    %v188 = vand.u32 %v187, 8388607
    %v189 = vor.u32 %v188, 8388608
    %v190 = vsub.s32 0, %v189
    %v191 = vadd.s32 %v186, 1
    %vm192 = vcmp.gt.s32.totalorder %v191, 0
    %v193 = vsel %vm192, %v191, 0
    %v194 = vshrl.u32 %v193, 5
    %v195 = vand.u32 %v193, 31
    %v196 = vsub.s32 32, %v195
    %v197 = vshrl.u32 683565275, %v196
    %v198 = vshll.u32 683565275, %v195
    %v199 = vshrl.u32 2475754826, %v196
    %v200 = vor.u32 %v198, %v199
    %v201 = vshll.u32 2475754826, %v195
    %v202 = vshrl.u32 2131351028, %v196
    %v203 = vor.u32 %v201, %v202
    %v204 = vshll.u32 2131351028, %v195
    %v205 = vshrl.u32 2102212464, %v196
    %v206 = vor.u32 %v204, %v205
    %v207 = vshll.u32 2102212464, %v195
    %v208 = vshrl.u32 920167782, %v196
    %v209 = vor.u32 %v207, %v208
    %v210 = vshll.u32 920167782, %v195
    %v211 = vshrl.u32 1326507024, %v196
    %v212 = vor.u32 %v210, %v211
    %vm213 = vcmp.lt.s32.totalorder %v194, 1
    %vm214 = vcmp.lt.s32.totalorder %v194, 2
    %vm215 = vcmp.lt.s32.totalorder %v194, 3
    %vm216 = vcmp.lt.s32.totalorder %v194, 4
    %v217 = vsel %vm213, %v197, %v200
    %v218 = vsel %vm216, %v206, 2102212464
    %v219 = vsel %vm215, %v203, %v218
    %v220 = vsel %vm214, %v217, %v219
    %v221 = vsel %vm213, %v200, %v203
    %v222 = vsel %vm216, %v209, 920167782
    %v223 = vsel %vm215, %v206, %v222
    %v224 = vsel %vm214, %v221, %v223
    %v225 = vsel %vm213, %v203, %v206
    %v226 = vsel %vm216, %v212, 1326507024
    %v227 = vsel %vm215, %v209, %v226
    %v228 = vsel %vm214, %v225, %v227
    %v229 = vshll.u32 %v189, 8
    %v230 = vmul.u32.u64.compose %v229, %v228
    %v231 = vextract.low.u32 %v230
    %v232 = vextract.high.u32 %v230
    %v233 = vmul.u32.u64.compose %v229, %v224
    %v234 = vextract.low.u32 %v233
    %v235 = vextract.high.u32 %v233
    %v236 = vmul.u32 %v229, %v220
    %v237 = vadd.s32 %v232, %v234
    %vm238 = vc.u32 %v232, %v234
    %v239 = vadd.s32 %v235, 1
    %v240 = vsel %vm238, %v239, %v235
    %v241 = vadd.s32 %v236, %v240
    %v242 = vadd.s32 %v241, 536870912
    %v243 = vshrl.u32 %v242, 30
    %v244 = vshll.u32 %v243, 30
    %v245 = vsub.s32 %v241, %v244
    %vm246 = vcmp.lt.s32.totalorder %v245, 0
    %v247 = vsub.s32 0, %v245
    %v248 = vsel %vm246, %v247, %v245
    %v249 = vclz %v248
    %v250 = vsub.s32 %v249, 2
    %vm251 = vcmp.gt.s32.totalorder 0, %v250
    %v252 = vsel %vm251, 0, %v250
    %v253 = vsub.s32 32, %v252
    %v254 = vshll.u32 %v245, %v252
    %v255 = vshrl.u32 %v237, %v253
    %v256 = vor.u32 %v254, %v255
    %v257 = vsub.s32 4294967266, %v252
    %v258 = vadd.s32 %v257, 127
    %v259 = vshll.u32 %v258, 23
    %v260 = vor.u32 4788187, %v259
    %v261 = vand.u32 2147483647, %v260
    %v263 = vcvt.s32.f32 %v256
    %v264 = vmul.f32 %v263, %v261
    %v265 = vxor.u32 %v264, 2147483648
    %v266 = vsel %vm183, %v265, %v264
    %v267 = vsub.s32 4, %v243
    %v268 = vsel %vm183, %v267, %v243
    %v269 = vsel %vm182, %v77, %v266
    %v270 = vsel %vm182, 0, %v268
    %v271 = vcosq.f32.pop %v269
    %v272 = vsinq.f32.pop %v269
    %vm273 = vweird.f32 %v77
    %v274 = vadd.s32 %v270, 3
    %v275 = vand.u32 %v274, 3
    %vm276 = vcmp.lt.s32.totalorder %v275, 2
    %vm277 = vcmp.eq.s32.totalorder %v275, 0
    %v278 = vxor.u32 %v272, 2147483648
    %v279 = vsel %vm277, %v271, %v278
    %vm280 = vcmp.eq.s32.totalorder %v275, 2
    %v281 = vxor.u32 %v271, 2147483648
    %v282 = vsel %vm280, %v281, %v272
    %v283 = vsel %vm276, %v279, %v282
    %v284 = vsel %vm273, nan, %v283
    %v285 = vsel %vm33, 1, 0
    %vm286 = vcmp.eq.s32.totalorder %v285, 1
    %v287 = vsel %vm286, %v180, %v284
    %288 = vst [vmem:[#allocation5] sm:$0x3] %v287
    // Predicated region
    $region10: #{tpu_custom_call.1} parent=1 // pred_check
      _
    $region11: #{tpu_custom_call.1} parent=1 // pred_check_branch
      %290 = sbr.rel (0) target = $region13
    $region12: #{tpu_custom_call.1} parent=1 // pred_region
      %s292 = ssub.s32 32, 32
      %293 = vsyncadd [#allocation4], %s292
      %s295 = sshll.u32 [#allocation5], 4
      %s296 = int_to_ptr.vmem [resolvable:$true] %s295
      %298 = dma.vmem_to_hbm [thread:$0]  %s296, 32, %s1, [#allocation4]
    $region13: #{tpu_custom_call.1} parent=1 // pred_fallthru
      _
    // Predicated region
    $region14: #{tpu_custom_call.1} parent=1 // pred_check
      _
    $region15: #{tpu_custom_call.1} parent=1 // pred_check_branch
      %300 = sbr.rel (0) target = $region17
    $region16: #{tpu_custom_call.1} parent=1 // pred_region
      %301 = dma.done [#allocation4], 32
    $region17: #{tpu_custom_call.1} parent=1 // pred_fallthru
      _
    %302 = vsyncpa [#allocation3], 1
    %303 = vsyncpa [#allocation4], 1

</llo_original>
